<compile_context>
chip_gen: v6e
topology: v6e:2x2x1
jax: 0.10.0
libtpu: 0.0.40
codegen_flags: <defaults>
</compile_context>

<pallas_src>
import jax
import jax.numpy as jnp
from jax.experimental import pallas as pl
from jax.experimental.pallas import tpu as pltpu

IN_DIM = 28 * 28     # 784
HID = 200            # true LayerNorm feature count
HID_PAD = 256        # lane-dense padded hidden width (multiple of 128)
OUT = 10
LN_EPS = 1e-5
NEG_SLOPE = 0.01     # PyTorch nn.LeakyReLU default
TB_MAX = 2048        # batch-tile upper bound (rows per grid step)
MIN_MEGACORE_STEPS = 4   # keep >= this many tiles when 2 TCs share the grid


def _leaky_relu(x):
    # For 0 <= slope < 1, max(x, slope*x) == LeakyReLU(x): mul+max (2 VALU ops)
    # instead of cmp+select+mul (3).
    return jnp.maximum(x, NEG_SLOPE * x)


def discriminator_kernel(x_ref, w1_ref, b1_ref, gamma_ref, beta_ref,
                         w2_ref, b2_ref, o_ref):
    # x_ref: (TB, 784) caller dtype ; w1_ref: (784, 256) bf16 ; w2_ref: (256, 10) bf16
    # b1/gamma/beta: (1, 256) f32 (pad cols zero) ; b2: (1, 10) f32
    #
    # Cast to bf16 for the MXU *inside* the kernel (VPU work hidden under the
    # x DMA); this is a no-op if the producer already hands us bf16.
    x = x_ref[...].astype(jnp.bfloat16)

    # Linear(784 -> 200[pad 256]) on the MXU, f32 accumulate, bias + LeakyReLU in f32.
    h = jnp.dot(x, w1_ref[...], preferred_element_type=jnp.float32)      # (TB, 256) f32
    h = _leaky_relu(h + b1_ref[...])
    # Padded columns [200:256] are exactly 0 here (w1/b1 pads are 0, leaky(0)=0).

    # LayerNorm(200): one-pass stats (sum, sum-of-squares); divide by the TRUE
    # feature count HID=200 -- zero pad columns contribute nothing to the sums.
    # (One-pass E[x^2]-mean^2 is adequate at this activation scale; a masked
    # two-pass form would be safer if reused with very large |mean|/std.)
    s = jnp.sum(h, axis=-1, keepdims=True)                               # (TB, 1)
    ss = jnp.sum(h * h, axis=-1, keepdims=True)                          # (TB, 1)
    mean = s * (1.0 / HID)
    var = ss * (1.0 / HID) - mean * mean
    hn = (h - mean) * jax.lax.rsqrt(var + LN_EPS)
    hn = hn * gamma_ref[...] + beta_ref[...]
    # gamma/beta pads are 0 -> padded columns are back to exactly 0.

    # Linear(200[pad 256] -> 10) + LeakyReLU. bf16 operands, f32 accumulate.
    y = jnp.dot(hn.astype(jnp.bfloat16), w2_ref[...],
                preferred_element_type=jnp.float32)                      # (TB, 10)
    o_ref[...] = _leaky_relu(y + b2_ref[...]).astype(o_ref.dtype)


def prepare_discriminator_params(params):
    """One-time parameter prep (call ONCE per weight update, not per forward):
    pad hidden dim 200 -> 256 (zero columns, gamma/beta pad = 0) and cast the
    matmul weights to bf16. Numerically identical to the unpadded model."""
    w1, b1, gamma, beta, w2, b2 = params
    pad = HID_PAD - HID
    w1p = jnp.pad(w1, ((0, 0), (0, pad))).astype(jnp.bfloat16)       # (784, 256)
    b1p = jnp.pad(b1, ((0, 0), (0, pad))).astype(jnp.float32)        # (1, 256)
    gammap = jnp.pad(gamma, ((0, 0), (0, pad))).astype(jnp.float32)  # (1, 256), pad=0
    betap = jnp.pad(beta, ((0, 0), (0, pad))).astype(jnp.float32)    # (1, 256), pad=0
    w2p = jnp.pad(w2, ((0, pad), (0, 0))).astype(jnp.bfloat16)       # (256, 10)
    b2p = b2.astype(jnp.float32)                                     # (1, 10)
    return w1p, b1p, gammap, betap, w2p, b2p


def _round_up(n, m):
    return ((n + m - 1) // m) * m


def _tensorcores_per_chip():
    # Only used as a heuristic for grid/tile sizing; safe fallback = 1.
    try:
        kind = jax.devices()[0].device_kind.lower()
    except Exception:
        return 1
    return 2 if any(tag in kind for tag in ("v7", "v5p", "v4")) else 1


def _choose_tb(batch):
    b16 = _round_up(max(batch, 1), 16)          # bf16 packs 2 rows / sublane
    tb = min(TB_MAX, b16)
    if _tensorcores_per_chip() > 1:
        # Keep >= MIN_MEGACORE_STEPS tiles for 2-TC load balance (but never
        # shrink tiles below 256 rows).
        target = _round_up(pl.cdiv(b16, MIN_MEGACORE_STEPS), 16)
        tb = max(16, min(tb, max(target, 256)))
    return tb


def _vmem_limit_bytes(tb, x_itemsize):
    x_buf = 2 * tb * IN_DIM * x_itemsize                                   # x, double-buffered
    w_buf = 2 * (IN_DIM * HID_PAD * 2 + 3 * HID_PAD * 4 + HID_PAD * OUT * 2 + OUT * 4)
    tmp = 4 * tb * HID_PAD * 4                                             # f32 temporaries headroom
    out_buf = 2 * tb * OUT * 4
    est = x_buf + w_buf + tmp + out_buf
    # Leave 2x headroom; never below 32 MiB (v5e scoped default is 16 MiB),
    # stays far under physical VMEM on all generations given the TB cap.
    return int(min(max(2 * est, 32 * 1024 * 1024), 100 * 1024 * 1024))


def discriminator_forward(x, prepared_params):
    """Forward pass. `prepared_params` must come from prepare_discriminator_params()."""
    w1p, b1p, gammap, betap, w2p, b2p = prepared_params
    B = x.shape[0]
    TB = _choose_tb(B)
    grid = (pl.cdiv(B, TB),)

    const = lambda i: (0, 0)   # weights / params stay resident across grid steps
    x_bytes = jnp.dtype(x.dtype).itemsize

    return pl.pallas_call(
        discriminator_kernel,
        out_shape=jax.ShapeDtypeStruct((B, OUT), jnp.float32),
        grid=grid,
        in_specs=[
            pl.BlockSpec((TB, IN_DIM), lambda i: (i, 0)),       # x tile (native dtype)
            pl.BlockSpec((IN_DIM, HID_PAD), const),             # w1 (resident)
            pl.BlockSpec((1, HID_PAD), const),                  # b1
            pl.BlockSpec((1, HID_PAD), const),                  # gamma
            pl.BlockSpec((1, HID_PAD), const),                  # beta
            pl.BlockSpec((HID_PAD, OUT), const),                # w2
            pl.BlockSpec((1, OUT), const),                      # b2
        ],
        out_specs=pl.BlockSpec((TB, OUT), lambda i: (i, 0)),
        compiler_params=pltpu.CompilerParams(
            dimension_semantics=("parallel",),                  # 2x TC where available
            vmem_limit_bytes=_vmem_limit_bytes(TB, x_bytes)),
        cost_estimate=pl.CostEstimate(
            flops=2 * B * (IN_DIM * HID_PAD + HID_PAD * OUT),
            transcendentals=B,                                  # rsqrt per row
            bytes_accessed=(B * IN_DIM * x_bytes                # x (native dtype)
                            + IN_DIM * HID_PAD * 2              # w1 bf16
                            + 3 * HID_PAD * 4                   # b1/gamma/beta f32
                            + HID_PAD * OUT * 2 + OUT * 4       # w2 bf16, b2 f32
                            + B * OUT * 4)),                    # output f32
    )(x, w1p, b1p, gammap, betap, w2p, b2p)


def init_params(key):
    k1, k2 = jax.random.split(key, 2)
    # Deterministic synthetic init (PyTorch-default-like scale for weights;
    # LayerNorm affine defaults: gamma=1, beta=0; biases=0).
    w1 = jax.random.uniform(k1, (IN_DIM, HID), jnp.float32,
                            minval=-1.0, maxval=1.0) / jnp.sqrt(IN_DIM)
    b1 = jnp.zeros((1, HID), jnp.float32)
    gamma = jnp.ones((1, HID), jnp.float32)
    beta = jnp.zeros((1, HID), jnp.float32)
    w2 = jax.random.uniform(k2, (HID, OUT), jnp.float32,
                            minval=-1.0, maxval=1.0) / jnp.sqrt(HID)
    b2 = jnp.zeros((1, OUT), jnp.float32)
    return (w1, b1, gamma, beta, w2, b2)


def reference_forward(x, params):
    # Pure-f32 reference matching the PyTorch module semantics.
    w1, b1, gamma, beta, w2, b2 = params
    h = jnp.where(x @ w1 + b1 > 0, x @ w1 + b1, NEG_SLOPE * (x @ w1 + b1))
    mean = jnp.mean(h, axis=-1, keepdims=True)
    var = jnp.mean((h - mean) ** 2, axis=-1, keepdims=True)
    h = (h - mean) / jnp.sqrt(var + LN_EPS) * gamma + beta
    y = h @ w2 + b2
    return jnp.where(y > 0, y, NEG_SLOPE * y)


# TODO(synk): training pieces of the PyTorch class (SGD optimizer, MSELoss,
# trainD/trainLoop, backward pass) are out of scope; only forward() is implemented.

if __name__ == "__main__":
    key = jax.random.PRNGKey(0)
    k_x, k_p = jax.random.split(key)

    B = 2
    x = jax.random.uniform(k_x, (B, IN_DIM), jnp.float32)   # MNIST-like pixels in [0, 1)
    params = init_params(k_p)

    # Parameter prep is hoisted out of the forward path (done once per weight update).
    prepared = prepare_discriminator_params(params)
    prepared = jax.block_until_ready(prepared)

    out = discriminator_forward(x, prepared)
    out = jax.block_until_ready(out)

    ref = reference_forward(x, params)
    assert out.shape == (B, OUT)
    # Kernel runs matmul operands in bf16 (f32 accumulation), so compare
    # against the f32 reference with a bf16-appropriate tolerance.
    assert jnp.allclose(out, ref, atol=3e-2, rtol=3e-2), "mismatch vs JAX reference"

    print("KERNEL_OK")
</pallas_src>

<mosaic_0001>
module attributes {stable_mosaic.version = 11 : i64} {
  func.func @discriminator_kernel(%arg0: i32, %arg1: memref<16x784xf32, #tpu.memory_space<vmem>>, %arg2: memref<784x256xbf16, #tpu.memory_space<vmem>>, %arg3: memref<1x256xf32, #tpu.memory_space<vmem>>, %arg4: memref<1x256xf32, #tpu.memory_space<vmem>>, %arg5: memref<1x256xf32, #tpu.memory_space<vmem>>, %arg6: memref<256x10xbf16, #tpu.memory_space<vmem>>, %arg7: memref<1x10xf32, #tpu.memory_space<vmem>>, %arg8: memref<16x10xf32, #tpu.memory_space<vmem>>) attributes {dimension_semantics = [#tpu.dimension_semantics<parallel>], iteration_bounds = array<i64: 1>, scalar_prefetch = 0 : i64, scratch_operands = 0 : i64, tpu.core_type = #tpu.core_type<tc>, window_params = [{transform_indices = @transform_0, window_bounds = array<i64: 16, 784>}, {pipeline_mode = #tpu.pipeline_mode<synchronous>, transform_indices = @transform_1, window_bounds = array<i64: 784, 256>}, {pipeline_mode = #tpu.pipeline_mode<synchronous>, transform_indices = @transform_2, window_bounds = array<i64: 1, 256>}, {pipeline_mode = #tpu.pipeline_mode<synchronous>, transform_indices = @transform_3, window_bounds = array<i64: 1, 256>}, {pipeline_mode = #tpu.pipeline_mode<synchronous>, transform_indices = @transform_4, window_bounds = array<i64: 1, 256>}, {pipeline_mode = #tpu.pipeline_mode<synchronous>, transform_indices = @transform_5, window_bounds = array<i64: 256, 10>}, {pipeline_mode = #tpu.pipeline_mode<synchronous>, transform_indices = @transform_6, window_bounds = array<i64: 1, 10>}, {transform_indices = @transform_7, window_bounds = array<i64: 16, 10>}]} {
    %c0 = arith.constant 0 : index
    %c0_0 = arith.constant 0 : index
    %0 = vector.load %arg1[%c0, %c0_0] : memref<16x784xf32, #tpu.memory_space<vmem>>, vector<16x784xf32>
    %1 = arith.truncf %0 : vector<16x784xf32> to vector<16x784xbf16>
    %c0_1 = arith.constant 0 : index
    %c0_2 = arith.constant 0 : index
    %2 = vector.load %arg2[%c0_1, %c0_2] : memref<784x256xbf16, #tpu.memory_space<vmem>>, vector<784x256xbf16>
    %cst = arith.constant dense<0.000000e+00> : vector<16x256xf32>
    %3 = tpu.matmul %1, %2, %cst {dimension_numbers = #tpu.dot_dimension_numbers<[1], [0], [0], [1], [0, 0, 1, 1], [], []>} : vector<16x784xbf16>, vector<784x256xbf16>, vector<16x256xf32> -> vector<16x256xf32>
    %c0_3 = arith.constant 0 : index
    %c0_4 = arith.constant 0 : index
    %4 = vector.load %arg3[%c0_3, %c0_4] : memref<1x256xf32, #tpu.memory_space<vmem>>, vector<1x256xf32>
    %5 = vector.broadcast %4 : vector<1x256xf32> to vector<16x256xf32>
    %6 = arith.addf %3, %5 : vector<16x256xf32>
    %cst_5 = arith.constant 0.00999999977 : f32
    %7 = vector.broadcast %cst_5 : f32 to vector<16x256xf32>
    %8 = arith.mulf %7, %6 : vector<16x256xf32>
    %9 = arith.maximumf %6, %8 : vector<16x256xf32>
    %cst_6 = arith.constant dense<0.000000e+00> : vector<16xf32>
    %10 = vector.multi_reduction <add>, %9, %cst_6 [1] : vector<16x256xf32> to vector<16xf32>
    %11 = vector.shape_cast %10 : vector<16xf32> to vector<16x1xf32>
    %12 = arith.mulf %9, %9 : vector<16x256xf32>
    %cst_7 = arith.constant dense<0.000000e+00> : vector<16xf32>
    %13 = vector.multi_reduction <add>, %12, %cst_7 [1] : vector<16x256xf32> to vector<16xf32>
    %14 = vector.shape_cast %13 : vector<16xf32> to vector<16x1xf32>
    %cst_8 = arith.constant 5.000000e-03 : f32
    %15 = vector.broadcast %cst_8 : f32 to vector<16x1xf32>
    %16 = arith.mulf %11, %15 : vector<16x1xf32>
    %cst_9 = arith.constant 5.000000e-03 : f32
    %17 = vector.broadcast %cst_9 : f32 to vector<16x1xf32>
    %18 = arith.mulf %14, %17 : vector<16x1xf32>
    %19 = arith.mulf %16, %16 : vector<16x1xf32>
    %20 = arith.subf %18, %19 : vector<16x1xf32>
    %21 = vector.broadcast %16 : vector<16x1xf32> to vector<16x256xf32>
    %22 = arith.subf %9, %21 : vector<16x256xf32>
    %cst_10 = arith.constant 9.99999974E-6 : f32
    %23 = vector.broadcast %cst_10 : f32 to vector<16x1xf32>
    %24 = arith.addf %20, %23 : vector<16x1xf32>
    %25 = math.rsqrt %24 : vector<16x1xf32>
    %26 = vector.broadcast %25 : vector<16x1xf32> to vector<16x256xf32>
    %27 = arith.mulf %22, %26 : vector<16x256xf32>
    %c0_11 = arith.constant 0 : index
    %c0_12 = arith.constant 0 : index
    %28 = vector.load %arg4[%c0_11, %c0_12] : memref<1x256xf32, #tpu.memory_space<vmem>>, vector<1x256xf32>
    %29 = vector.broadcast %28 : vector<1x256xf32> to vector<16x256xf32>
    %30 = arith.mulf %27, %29 : vector<16x256xf32>
    %c0_13 = arith.constant 0 : index
    %c0_14 = arith.constant 0 : index
    %31 = vector.load %arg5[%c0_13, %c0_14] : memref<1x256xf32, #tpu.memory_space<vmem>>, vector<1x256xf32>
    %32 = vector.broadcast %31 : vector<1x256xf32> to vector<16x256xf32>
    %33 = arith.addf %30, %32 : vector<16x256xf32>
    %34 = arith.truncf %33 : vector<16x256xf32> to vector<16x256xbf16>
    %c0_15 = arith.constant 0 : index
    %c0_16 = arith.constant 0 : index
    %35 = vector.load %arg6[%c0_15, %c0_16] : memref<256x10xbf16, #tpu.memory_space<vmem>>, vector<256x10xbf16>
    %cst_17 = arith.constant dense<0.000000e+00> : vector<16x10xf32>
    %36 = tpu.matmul %34, %35, %cst_17 {dimension_numbers = #tpu.dot_dimension_numbers<[1], [0], [0], [1], [0, 0, 1, 1], [], []>} : vector<16x256xbf16>, vector<256x10xbf16>, vector<16x10xf32> -> vector<16x10xf32>
    %c0_18 = arith.constant 0 : index
    %c0_19 = arith.constant 0 : index
    %37 = vector.load %arg7[%c0_18, %c0_19] : memref<1x10xf32, #tpu.memory_space<vmem>>, vector<1x10xf32>
    %38 = vector.broadcast %37 : vector<1x10xf32> to vector<16x10xf32>
    %39 = arith.addf %36, %38 : vector<16x10xf32>
    %cst_20 = arith.constant 0.00999999977 : f32
    %40 = vector.broadcast %cst_20 : f32 to vector<16x10xf32>
    %41 = arith.mulf %40, %39 : vector<16x10xf32>
    %42 = arith.maximumf %39, %41 : vector<16x10xf32>
    %c0_21 = arith.constant 0 : index
    %c0_22 = arith.constant 0 : index
    %43 = vector.load %arg8[%c0_21, %c0_22] : memref<16x10xf32, #tpu.memory_space<vmem>>, vector<16x10xf32>
    tpu.vector_store %arg8[%c0_21, %c0_22], %42 {strides = array<i32>} : memref<16x10xf32, #tpu.memory_space<vmem>>, vector<16x10xf32>,
    return
  }
  func.func @transform_0(%arg0: i32) -> (i32, i32) {
    %c0_i32 = arith.constant 0 : i32
    %c0_i32_0 = arith.constant 0 : i32
    return %arg0, %c0_i32 : i32, i32
  }
  func.func @transform_1(%arg0: i32) -> (i32, i32) {
    %c0_i32 = arith.constant 0 : i32
    %c0_i32_0 = arith.constant 0 : i32
    %c0_i32_1 = arith.constant 0 : i32
    return %c0_i32, %c0_i32_0 : i32, i32
  }
  func.func @transform_2(%arg0: i32) -> (i32, i32) {
    %c0_i32 = arith.constant 0 : i32
    %c0_i32_0 = arith.constant 0 : i32
    %c0_i32_1 = arith.constant 0 : i32
    return %c0_i32, %c0_i32_0 : i32, i32
  }
  func.func @transform_3(%arg0: i32) -> (i32, i32) {
    %c0_i32 = arith.constant 0 : i32
    %c0_i32_0 = arith.constant 0 : i32
    %c0_i32_1 = arith.constant 0 : i32
    return %c0_i32, %c0_i32_0 : i32, i32
  }
  func.func @transform_4(%arg0: i32) -> (i32, i32) {
    %c0_i32 = arith.constant 0 : i32
    %c0_i32_0 = arith.constant 0 : i32
    %c0_i32_1 = arith.constant 0 : i32
    return %c0_i32, %c0_i32_0 : i32, i32
  }
  func.func @transform_5(%arg0: i32) -> (i32, i32) {
    %c0_i32 = arith.constant 0 : i32
    %c0_i32_0 = arith.constant 0 : i32
    %c0_i32_1 = arith.constant 0 : i32
    return %c0_i32, %c0_i32_0 : i32, i32
  }
  func.func @transform_6(%arg0: i32) -> (i32, i32) {
    %c0_i32 = arith.constant 0 : i32
    %c0_i32_0 = arith.constant 0 : i32
    %c0_i32_1 = arith.constant 0 : i32
    return %c0_i32, %c0_i32_0 : i32, i32
  }
  func.func @transform_7(%arg0: i32) -> (i32, i32) {
    %c0_i32 = arith.constant 0 : i32
    %c0_i32_0 = arith.constant 0 : i32
    return %arg0, %c0_i32 : i32, i32
  }
}

</mosaic_0001>

<llo_original>
// kernel: tpu_custom_call.1
$region0: #{tpu_custom_call.1}
  #allocation0 [shape = 'u32[]', space=smem, size = 0x4, offset = 0x4, fixed_abs, tag = 'smem constant byte address 0x4 - core index']
  #allocation1 [shape = 'u32[144,128]{1,0:T(1,128)}', space=vmem, size = 0x12000, scoped, tag = 'internal scratch']
  %s0 = inlined_call_operand.vmem [shape: f32[2,784], index: 0, kind: input, shape index: {}]
  %s1 = inlined_call_operand.hbm [shape: bf16[784,256], index: 1, kind: input, shape index: {}]
  %s2 = inlined_call_operand.vmem [shape: f32[1,256], index: 2, kind: input, shape index: {}]
  %s3 = inlined_call_operand.vmem [shape: f32[1,256], index: 3, kind: input, shape index: {}]
  %s4 = inlined_call_operand.vmem [shape: f32[1,256], index: 4, kind: input, shape index: {}]
  %s5 = inlined_call_operand.vmem [shape: bf16[256,10], index: 5, kind: input, shape index: {}]
  %s6 = inlined_call_operand.vmem [shape: f32[1,10], index: 6, kind: input, shape index: {}]
  %s7 = inlined_call_operand.hbm [shape: f32[2,10], index: 7, kind: output, shape index: {}]
  %s8 = sld [smem:[#allocation0]]
  $region42: #{tpu_custom_call.1} parent=0
    _
  %s10 = ssub.s32 1, %s8
  %s11 = scalar_select 0, %s10, %s8
  $region1: #{tpu_custom_call.1} parent=0
    #allocation2 [shape = 'u8[401408]{0}', space=vmem, size = 0x62000, scoped, tag = 'input window, operand 1, single buffered']
    #allocation3 [shape = 's32[1]{0}', space=sflag, size = 0x4, scoped, tag = 'scoped memory for tpu_custom_call.1']
    #allocation4 [shape = 's32[1]{0}', space=sflag, size = 0x4, scoped, tag = 'scoped memory for tpu_custom_call.1']
    #allocation5 [shape = 'u8[8192]{0}', space=vmem, size = 0x2000, scoped, tag = 'output window, operand 0, single buffered']
    %12 = vsyncpa [#allocation3], 0
    %13 = vsyncpa [#allocation4], 0
    // Predicated region
    $region2: #{tpu_custom_call.1} parent=1 // pred_check
      _
    $region3: #{tpu_custom_call.1} parent=1 // pred_check_branch
      %15 = sbr.rel (0) target = $region5
    $region4: #{tpu_custom_call.1} parent=1 // pred_region
      _
    $region5: #{tpu_custom_call.1} parent=1 // pred_fallthru
      _
    // Predicated region
    $region6: #{tpu_custom_call.1} parent=1 // pred_check
      _
    $region7: #{tpu_custom_call.1} parent=1 // pred_check_branch
      %17 = sbr.rel (0) target = $region9
    $region8: #{tpu_custom_call.1} parent=1 // pred_region
      %s19 = ssub.s32 12544, 12544
      %20 = vsyncadd [#allocation3], %s19
      %s21 = sshll.u32 [#allocation2], 4
      %s22 = int_to_ptr.vmem [resolvable:$true] %s21
      %27 = dma.hbm_to_vmem [thread:$0]  %s1, 12544, %s22, [#allocation3], 128, 128, 8
    $region9: #{tpu_custom_call.1} parent=1 // pred_fallthru
      _
    // Predicated region
    $region10: #{tpu_custom_call.1} parent=1 // pred_check
      _
    $region11: #{tpu_custom_call.1} parent=1 // pred_check_branch
      %29 = sbr.rel (0) target = $region13
    $region12: #{tpu_custom_call.1} parent=1 // pred_region
      _
    $region13: #{tpu_custom_call.1} parent=1 // pred_fallthru
      _
    // Predicated region
    $region14: #{tpu_custom_call.1} parent=1 // pred_check
      _
    $region15: #{tpu_custom_call.1} parent=1 // pred_check_branch
      %31 = sbr.rel (0) target = $region17
    $region16: #{tpu_custom_call.1} parent=1 // pred_region
      _
    $region17: #{tpu_custom_call.1} parent=1 // pred_fallthru
      _
    // Predicated region
    $region18: #{tpu_custom_call.1} parent=1 // pred_check
      _
    $region19: #{tpu_custom_call.1} parent=1 // pred_check_branch
      %33 = sbr.rel (0) target = $region21
    $region20: #{tpu_custom_call.1} parent=1 // pred_region
      _
    $region21: #{tpu_custom_call.1} parent=1 // pred_fallthru
      _
    // Predicated region
    $region22: #{tpu_custom_call.1} parent=1 // pred_check
      _
    $region23: #{tpu_custom_call.1} parent=1 // pred_check_branch
      %35 = sbr.rel (0) target = $region25
    $region24: #{tpu_custom_call.1} parent=1 // pred_region
      _
    $region25: #{tpu_custom_call.1} parent=1 // pred_fallthru
      _
    // Predicated region
    $region26: #{tpu_custom_call.1} parent=1 // pred_check
      _
    $region27: #{tpu_custom_call.1} parent=1 // pred_check_branch
      %37 = sbr.rel (0) target = $region29
    $region28: #{tpu_custom_call.1} parent=1 // pred_region
      _
    $region29: #{tpu_custom_call.1} parent=1 // pred_fallthru
      _
    // Predicated region
    $region30: #{tpu_custom_call.1} parent=1 // pred_check
      _
    $region31: #{tpu_custom_call.1} parent=1 // pred_check_branch
      %39 = sbr.rel (0) target = $region33
    $region32: #{tpu_custom_call.1} parent=1 // pred_region
      %40 = dma.done [#allocation3], 12544
    $region33: #{tpu_custom_call.1} parent=1 // pred_fallthru
      _
    %v42 = vld [vmem:[%s0] sm:$0xff]
    %v43 = vld [vmem:[%s0 + $0x8] sm:$0x3f]
    %v44 = vld [vmem:[%s0 + $0xe] sm:$0xff]
    %v45 = vld [vmem:[%s0 + $0x16] sm:$0x3f]
    %v46 = vld [vmem:[%s0 + $0x1c] sm:$0xff]
    %v47 = vld [vmem:[%s0 + $0x24] sm:$0x3f]
    %v48 = vld [vmem:[%s0 + $0x2a] sm:$0xff]
    %v49 = vld [vmem:[%s0 + $0x32] sm:$0x3f]
    %v50 = vld [vmem:[%s0 + $0x38] sm:$0xff]
    %v51 = vld [vmem:[%s0 + $0x40] sm:$0x3f]
    %v52 = vld [vmem:[%s0 + $0x46] sm:$0xff]
    %v53 = vld [vmem:[%s0 + $0x4e] sm:$0x3f]
    %v54 = vld [vmem:[%s0 + $0x54] sm:$0xff]
    %v55 = vld [vmem:[%s0 + $0x5c] sm:$0x3f]
    %v56 = vld [vmem:[%s0 + $0x62] sm:$0xff]
    %v57 = vld [vmem:[%s0 + $0x6a] sm:$0x3f]
    %v74 = vcombine.low %v42, %v44
    %v75 = vcombine.high %v42, %v44
    %v76 = vcombine.low %v46, %v48
    %v77 = vcombine.high %v46, %v48
    %v79 = vunpack.c.l.s4 1983009808
    %v80 = vunpack.c.0.s8 %v79
    %v81 = vlaneseq
    %v82 = vshrl.u32 %v81, 7
    %v83 = vsub.s32 %v80, %v82
    %v84 = vrot.slane %v74, %v83
    %v86 = vunpack.c.l.s4 1983009808
    %v87 = vunpack.c.0.s8 %v86
    %v88 = vlaneseq
    %v89 = vshrl.u32 %v88, 7
    %v90 = vsub.s32 %v87, %v89
    %v91 = vrot.slane %v75, %v90
    %v93 = vunpack.c.l.s4 1983009808
    %v94 = vunpack.c.0.s8 %v93
    %v95 = vlaneseq
    %v96 = vshrl.u32 %v95, 7
    %v97 = vsub.s32 %v94, %v96
    %v98 = vrot.slane %v76, %v97
    %v100 = vunpack.c.l.s4 1983009808
    %v101 = vunpack.c.0.s8 %v100
    %v102 = vlaneseq
    %v103 = vshrl.u32 %v102, 7
    %v104 = vsub.s32 %v101, %v103
    %v105 = vrot.slane %v77, %v104
    %v106 = vcombine.low %v84, %v98
    %v107 = vcombine.high %v84, %v98
    %v108 = vcombine.low %v91, %v105
    %v109 = vcombine.high %v91, %v105
    %v110 = vcombine.low %v43, %v45
    %v111 = vcombine.high %v43, %v45
    %v112 = vcombine.low %v47, %v49
    %v113 = vcombine.high %v47, %v49
    %v115 = vunpack.c.l.s4 1983009808
    %v116 = vunpack.c.0.s8 %v115
    %v117 = vlaneseq
    %v118 = vshrl.u32 %v117, 7
    %v119 = vsub.s32 %v116, %v118
    %v120 = vrot.slane %v110, %v119
    %v122 = vunpack.c.l.s4 1983009808
    %v123 = vunpack.c.0.s8 %v122
    %v124 = vlaneseq
    %v125 = vshrl.u32 %v124, 7
    %v126 = vsub.s32 %v123, %v125
    %v127 = vrot.slane %v111, %v126
    %v129 = vunpack.c.l.s4 1983009808
    %v130 = vunpack.c.0.s8 %v129
    %v131 = vlaneseq
    %v132 = vshrl.u32 %v131, 7
    %v133 = vsub.s32 %v130, %v132
    %v134 = vrot.slane %v112, %v133
    %v136 = vunpack.c.l.s4 1983009808
    %v137 = vunpack.c.0.s8 %v136
    %v138 = vlaneseq
    %v139 = vshrl.u32 %v138, 7
    %v140 = vsub.s32 %v137, %v139
    %v141 = vrot.slane %v113, %v140
    %v142 = vcombine.low %v120, %v134
    %v143 = vcombine.high %v120, %v134
    %v144 = vcombine.low %v127, %v141
    %v145 = vcombine.low %v50, %v52
    %v146 = vcombine.high %v50, %v52
    %v147 = vcombine.low %v54, %v56
    %v148 = vcombine.high %v54, %v56
    %v150 = vunpack.c.l.s4 1983009808
    %v151 = vunpack.c.0.s8 %v150
    %v152 = vlaneseq
    %v153 = vshrl.u32 %v152, 7
    %v154 = vsub.s32 %v151, %v153
    %v155 = vrot.slane %v145, %v154
    %v157 = vunpack.c.l.s4 1983009808
    %v158 = vunpack.c.0.s8 %v157
    %v159 = vlaneseq
    %v160 = vshrl.u32 %v159, 7
    %v161 = vsub.s32 %v158, %v160
    %v162 = vrot.slane %v146, %v161
    %v164 = vunpack.c.l.s4 1983009808
    %v165 = vunpack.c.0.s8 %v164
    %v166 = vlaneseq
    %v167 = vshrl.u32 %v166, 7
    %v168 = vsub.s32 %v165, %v167
    %v169 = vrot.slane %v147, %v168
    %v171 = vunpack.c.l.s4 1983009808
    %v172 = vunpack.c.0.s8 %v171
    %v173 = vlaneseq
    %v174 = vshrl.u32 %v173, 7
    %v175 = vsub.s32 %v172, %v174
    %v176 = vrot.slane %v148, %v175
    %v177 = vcombine.low %v155, %v169
    %v178 = vcombine.high %v155, %v169
    %v179 = vcombine.low %v162, %v176
    %v180 = vcombine.high %v162, %v176
    %v181 = vcombine.low %v51, %v53
    %v182 = vcombine.high %v51, %v53
    %v183 = vcombine.low %v55, %v57
    %v184 = vcombine.high %v55, %v57
    %v186 = vunpack.c.l.s4 1983009808
    %v187 = vunpack.c.0.s8 %v186
    %v188 = vlaneseq
    %v189 = vshrl.u32 %v188, 7
    %v190 = vsub.s32 %v187, %v189
    %v191 = vrot.slane %v181, %v190
    %v193 = vunpack.c.l.s4 1983009808
    %v194 = vunpack.c.0.s8 %v193
    %v195 = vlaneseq
    %v196 = vshrl.u32 %v195, 7
    %v197 = vsub.s32 %v194, %v196
    %v198 = vrot.slane %v182, %v197
    %v200 = vunpack.c.l.s4 1983009808
    %v201 = vunpack.c.0.s8 %v200
    %v202 = vlaneseq
    %v203 = vshrl.u32 %v202, 7
    %v204 = vsub.s32 %v201, %v203
    %v205 = vrot.slane %v183, %v204
    %v207 = vunpack.c.l.s4 1983009808
    %v208 = vunpack.c.0.s8 %v207
    %v209 = vlaneseq
    %v210 = vshrl.u32 %v209, 7
    %v211 = vsub.s32 %v208, %v210
    %v212 = vrot.slane %v184, %v211
    %v213 = vcombine.low %v191, %v205
    %v214 = vcombine.high %v191, %v205
    %v215 = vcombine.low %v198, %v212
    %v230 = vpack.c.bf16 %v177, %v106
    %v231 = vpack.c.bf16 %v178, %v107
    %v232 = vpack.c.bf16 %v179, %v108
    %v233 = vpack.c.bf16 %v180, %v109
    %v234 = vpack.c.bf16 %v213, %v142
    %v235 = vpack.c.bf16 %v214, %v143
    %v236 = vpack.c.bf16 %v215, %v144
    %v237 = vld [vmem:[#allocation2] sm:$0xff]
    %v238 = vld [vmem:[#allocation2 + $0x8] sm:$0xff]
    %v239 = vld [vmem:[#allocation2 + $0x10] sm:$0xff]
    %v240 = vld [vmem:[#allocation2 + $0x18] sm:$0xff]
    %v241 = vld [vmem:[#allocation2 + $0x20] sm:$0xff]
    %v242 = vld [vmem:[#allocation2 + $0x28] sm:$0xff]
    %v243 = vld [vmem:[#allocation2 + $0x30] sm:$0xff]
    %v244 = vld [vmem:[#allocation2 + $0x38] sm:$0xff]
    %v245 = vld [vmem:[#allocation2 + $0x40] sm:$0xff]
    %v246 = vld [vmem:[#allocation2 + $0x48] sm:$0xff]
    %v247 = vld [vmem:[#allocation2 + $0x50] sm:$0xff]
    %v248 = vld [vmem:[#allocation2 + $0x58] sm:$0xff]
    %v249 = vld [vmem:[#allocation2 + $0x60] sm:$0xff]
    %v250 = vld [vmem:[#allocation2 + $0x68] sm:$0xff]
    %v251 = vld [vmem:[#allocation2 + $0x70] sm:$0xff]
    %v252 = vld [vmem:[#allocation2 + $0x78] sm:$0xff]
    %v253 = vld [vmem:[#allocation2 + $0x80] sm:$0xff]
    %v254 = vld [vmem:[#allocation2 + $0x88] sm:$0xff]
    %v255 = vld [vmem:[#allocation2 + $0x90] sm:$0xff]
    %v256 = vld [vmem:[#allocation2 + $0x98] sm:$0xff]
    %v257 = vld [vmem:[#allocation2 + $0xa0] sm:$0xff]
    %v258 = vld [vmem:[#allocation2 + $0xa8] sm:$0xff]
    %v259 = vld [vmem:[#allocation2 + $0xb0] sm:$0xff]
    %v260 = vld [vmem:[#allocation2 + $0xb8] sm:$0xff]
    %v261 = vld [vmem:[#allocation2 + $0xc0] sm:$0xff]
    %v262 = vld [vmem:[#allocation2 + $0xc8] sm:$0xff]
    %v263 = vld [vmem:[#allocation2 + $0xd0] sm:$0xff]
    %v264 = vld [vmem:[#allocation2 + $0xd8] sm:$0xff]
    %v265 = vld [vmem:[#allocation2 + $0xe0] sm:$0xff]
    %v266 = vld [vmem:[#allocation2 + $0xe8] sm:$0xff]
    %v267 = vld [vmem:[#allocation2 + $0xf0] sm:$0xff]
    %v268 = vld [vmem:[#allocation2 + $0xf8] sm:$0xff]
    %v269 = vld [vmem:[#allocation2 + $0x100] sm:$0xff]
    %v270 = vld [vmem:[#allocation2 + $0x108] sm:$0xff]
    %v271 = vld [vmem:[#allocation2 + $0x110] sm:$0xff]
    %v272 = vld [vmem:[#allocation2 + $0x118] sm:$0xff]
    %v273 = vld [vmem:[#allocation2 + $0x120] sm:$0xff]
    %v274 = vld [vmem:[#allocation2 + $0x128] sm:$0xff]
    %v275 = vld [vmem:[#allocation2 + $0x130] sm:$0xff]
    %v276 = vld [vmem:[#allocation2 + $0x138] sm:$0xff]
    %v277 = vld [vmem:[#allocation2 + $0x140] sm:$0xff]
    %v278 = vld [vmem:[#allocation2 + $0x148] sm:$0xff]
    %v279 = vld [vmem:[#allocation2 + $0x150] sm:$0xff]
    %v280 = vld [vmem:[#allocation2 + $0x158] sm:$0xff]
    %v281 = vld [vmem:[#allocation2 + $0x160] sm:$0xff]
    %v282 = vld [vmem:[#allocation2 + $0x168] sm:$0xff]
    %v283 = vld [vmem:[#allocation2 + $0x170] sm:$0xff]
    %v284 = vld [vmem:[#allocation2 + $0x178] sm:$0xff]
    %v285 = vld [vmem:[#allocation2 + $0x180] sm:$0xff]
    %v286 = vld [vmem:[#allocation2 + $0x188] sm:$0xff]
    %v287 = vld [vmem:[#allocation2 + $0x190] sm:$0xff]
    %v288 = vld [vmem:[#allocation2 + $0x198] sm:$0xff]
    %v289 = vld [vmem:[#allocation2 + $0x1a0] sm:$0xff]
    %v290 = vld [vmem:[#allocation2 + $0x1a8] sm:$0xff]
    %v291 = vld [vmem:[#allocation2 + $0x1b0] sm:$0xff]
    %v292 = vld [vmem:[#allocation2 + $0x1b8] sm:$0xff]
    %v293 = vld [vmem:[#allocation2 + $0x1c0] sm:$0xff]
    %v294 = vld [vmem:[#allocation2 + $0x1c8] sm:$0xff]
    %v295 = vld [vmem:[#allocation2 + $0x1d0] sm:$0xff]
    %v296 = vld [vmem:[#allocation2 + $0x1d8] sm:$0xff]
    %v297 = vld [vmem:[#allocation2 + $0x1e0] sm:$0xff]
    %v298 = vld [vmem:[#allocation2 + $0x1e8] sm:$0xff]
    %v299 = vld [vmem:[#allocation2 + $0x1f0] sm:$0xff]
    %v300 = vld [vmem:[#allocation2 + $0x1f8] sm:$0xff]
    %v301 = vld [vmem:[#allocation2 + $0x200] sm:$0xff]
    %v302 = vld [vmem:[#allocation2 + $0x208] sm:$0xff]
    %v303 = vld [vmem:[#allocation2 + $0x210] sm:$0xff]
    %v304 = vld [vmem:[#allocation2 + $0x218] sm:$0xff]
    %v305 = vld [vmem:[#allocation2 + $0x220] sm:$0xff]
    %v306 = vld [vmem:[#allocation2 + $0x228] sm:$0xff]
    %v307 = vld [vmem:[#allocation2 + $0x230] sm:$0xff]
    %v308 = vld [vmem:[#allocation2 + $0x238] sm:$0xff]
    %v309 = vld [vmem:[#allocation2 + $0x240] sm:$0xff]
    %v310 = vld [vmem:[#allocation2 + $0x248] sm:$0xff]
    %v311 = vld [vmem:[#allocation2 + $0x250] sm:$0xff]
    %v312 = vld [vmem:[#allocation2 + $0x258] sm:$0xff]
    %v313 = vld [vmem:[#allocation2 + $0x260] sm:$0xff]
    %v314 = vld [vmem:[#allocation2 + $0x268] sm:$0xff]
    %v315 = vld [vmem:[#allocation2 + $0x270] sm:$0xff]
    %v316 = vld [vmem:[#allocation2 + $0x278] sm:$0xff]
    %v317 = vld [vmem:[#allocation2 + $0x280] sm:$0xff]
    %v318 = vld [vmem:[#allocation2 + $0x288] sm:$0xff]
    %v319 = vld [vmem:[#allocation2 + $0x290] sm:$0xff]
    %v320 = vld [vmem:[#allocation2 + $0x298] sm:$0xff]
    %v321 = vld [vmem:[#allocation2 + $0x2a0] sm:$0xff]
    %v322 = vld [vmem:[#allocation2 + $0x2a8] sm:$0xff]
    %v323 = vld [vmem:[#allocation2 + $0x2b0] sm:$0xff]
    %v324 = vld [vmem:[#allocation2 + $0x2b8] sm:$0xff]
    %v325 = vld [vmem:[#allocation2 + $0x2c0] sm:$0xff]
    %v326 = vld [vmem:[#allocation2 + $0x2c8] sm:$0xff]
    %v327 = vld [vmem:[#allocation2 + $0x2d0] sm:$0xff]
    %v328 = vld [vmem:[#allocation2 + $0x2d8] sm:$0xff]
    %v329 = vld [vmem:[#allocation2 + $0x2e0] sm:$0xff]
    %v330 = vld [vmem:[#allocation2 + $0x2e8] sm:$0xff]
    %v331 = vld [vmem:[#allocation2 + $0x2f0] sm:$0xff]
    %v332 = vld [vmem:[#allocation2 + $0x2f8] sm:$0xff]
    %v333 = vld [vmem:[#allocation2 + $0x300] sm:$0xff]
    %v334 = vld [vmem:[#allocation2 + $0x308] sm:$0xff]
    %v335 = vld [vmem:[%s2] sm:$0x3]
    %v337 = vlaneseq
    %v338 = vshrl.u32 %v337, 7
    %v339 = vsub.s32 0, %v338
    %v340 = vrot.slane %v335, %v339
    %v341 = vlaneseq
    %v342 = vshrl.u32 %v341, 7
    %v343 = vsub.s32 1, %v342
    %v344 = vrot.slane %v335, %v343
    %v445 = vunpack.c.l.b16 %v237
    %v446 = vunpack.c.h.b16 %v237
    %v447 = vunpack.c.l.b16 %v238
    %v448 = vunpack.c.h.b16 %v238
    %v449 = vunpack.c.l.b16 %v239
    %v450 = vunpack.c.h.b16 %v239
    %v451 = vunpack.c.l.b16 %v240
    %v452 = vunpack.c.h.b16 %v240
    %v453 = vunpack.c.l.b16 %v241
    %v454 = vunpack.c.h.b16 %v241
    %v455 = vunpack.c.l.b16 %v242
    %v456 = vunpack.c.h.b16 %v242
    %v457 = vunpack.c.l.b16 %v243
    %v458 = vunpack.c.h.b16 %v243
    %v459 = vunpack.c.l.b16 %v244
    %v460 = vunpack.c.h.b16 %v244
    %v461 = vunpack.c.l.b16 %v245
    %v462 = vunpack.c.h.b16 %v245
    %v463 = vunpack.c.l.b16 %v246
    %v464 = vunpack.c.h.b16 %v246
    %v465 = vunpack.c.l.b16 %v247
    %v466 = vunpack.c.h.b16 %v247
    %v467 = vunpack.c.l.b16 %v248
    %v468 = vunpack.c.h.b16 %v248
    %v469 = vunpack.c.l.b16 %v249
    %v470 = vunpack.c.h.b16 %v249
    %v471 = vunpack.c.l.b16 %v250
    %v472 = vunpack.c.h.b16 %v250
    %v473 = vunpack.c.l.b16 %v251
    %v474 = vunpack.c.h.b16 %v251
    %v475 = vunpack.c.l.b16 %v252
    %v476 = vunpack.c.h.b16 %v252
    %v477 = vunpack.c.l.b16 %v253
    %v478 = vunpack.c.h.b16 %v253
    %v479 = vunpack.c.l.b16 %v254
    %v480 = vunpack.c.h.b16 %v254
    %v481 = vunpack.c.l.b16 %v255
    %v482 = vunpack.c.h.b16 %v255
    %v483 = vunpack.c.l.b16 %v256
    %v484 = vunpack.c.h.b16 %v256
    %v485 = vunpack.c.l.b16 %v257
    %v486 = vunpack.c.h.b16 %v257
    %v487 = vunpack.c.l.b16 %v258
    %v488 = vunpack.c.h.b16 %v258
    %v489 = vunpack.c.l.b16 %v259
    %v490 = vunpack.c.h.b16 %v259
    %v491 = vunpack.c.l.b16 %v260
    %v492 = vunpack.c.h.b16 %v260
    %v493 = vunpack.c.l.b16 %v261
    %v494 = vunpack.c.h.b16 %v261
    %v495 = vunpack.c.l.b16 %v262
    %v496 = vunpack.c.h.b16 %v262
    %v497 = vunpack.c.l.b16 %v263
    %v498 = vunpack.c.h.b16 %v263
    %v499 = vunpack.c.l.b16 %v264
    %v500 = vunpack.c.h.b16 %v264
    %v501 = vunpack.c.l.b16 %v265
    %v502 = vunpack.c.h.b16 %v265
    %v503 = vunpack.c.l.b16 %v266
    %v504 = vunpack.c.h.b16 %v266
    %v505 = vunpack.c.l.b16 %v267
    %v506 = vunpack.c.h.b16 %v267
    %v507 = vunpack.c.l.b16 %v268
    %v508 = vunpack.c.h.b16 %v268
    %v509 = vunpack.c.l.b16 %v269
    %v510 = vunpack.c.h.b16 %v269
    %v511 = vunpack.c.l.b16 %v270
    %v512 = vunpack.c.h.b16 %v270
    %v513 = vunpack.c.l.b16 %v271
    %v514 = vunpack.c.h.b16 %v271
    %v515 = vunpack.c.l.b16 %v272
    %v516 = vunpack.c.h.b16 %v272
    %v517 = vunpack.c.l.b16 %v273
    %v518 = vunpack.c.h.b16 %v273
    %v519 = vunpack.c.l.b16 %v274
    %v520 = vunpack.c.h.b16 %v274
    %v521 = vunpack.c.l.b16 %v275
    %v522 = vunpack.c.h.b16 %v275
    %v523 = vunpack.c.l.b16 %v276
    %v524 = vunpack.c.h.b16 %v276
    %v525 = vunpack.c.l.b16 %v277
    %v526 = vunpack.c.h.b16 %v277
    %v527 = vunpack.c.l.b16 %v278
    %v528 = vunpack.c.h.b16 %v278
    %v529 = vunpack.c.l.b16 %v279
    %v530 = vunpack.c.h.b16 %v279
    %v531 = vunpack.c.l.b16 %v280
    %v532 = vunpack.c.h.b16 %v280
    %v533 = vunpack.c.l.b16 %v281
    %v534 = vunpack.c.h.b16 %v281
    %v535 = vunpack.c.l.b16 %v282
    %v536 = vunpack.c.h.b16 %v282
    %v537 = vunpack.c.l.b16 %v283
    %v538 = vunpack.c.h.b16 %v283
    %v539 = vunpack.c.l.b16 %v284
    %v540 = vunpack.c.h.b16 %v284
    %v541 = vunpack.c.l.b16 %v285
    %v542 = vunpack.c.h.b16 %v285
    %v543 = vunpack.c.l.b16 %v286
    %v544 = vunpack.c.h.b16 %v286
    %v545 = vunpack.c.l.b16 %v287
    %v546 = vunpack.c.h.b16 %v287
    %v547 = vunpack.c.l.b16 %v288
    %v548 = vunpack.c.h.b16 %v288
    %v549 = vunpack.c.l.b16 %v289
    %v550 = vunpack.c.h.b16 %v289
    %v551 = vunpack.c.l.b16 %v290
    %v552 = vunpack.c.h.b16 %v290
    %v553 = vunpack.c.l.b16 %v291
    %v554 = vunpack.c.h.b16 %v291
    %v555 = vunpack.c.l.b16 %v292
    %v556 = vunpack.c.h.b16 %v292
    %v557 = vunpack.c.l.b16 %v293
    %v558 = vunpack.c.h.b16 %v293
    %v559 = vunpack.c.l.b16 %v294
    %v560 = vunpack.c.h.b16 %v294
    %v561 = vunpack.c.l.b16 %v295
    %v562 = vunpack.c.h.b16 %v295
    %v563 = vunpack.c.l.b16 %v296
    %v564 = vunpack.c.h.b16 %v296
    %v565 = vunpack.c.l.b16 %v297
    %v566 = vunpack.c.h.b16 %v297
    %v567 = vunpack.c.l.b16 %v298
    %v568 = vunpack.c.h.b16 %v298
    %v569 = vunpack.c.l.b16 %v299
    %v570 = vunpack.c.h.b16 %v299
    %v571 = vunpack.c.l.b16 %v300
    %v572 = vunpack.c.h.b16 %v300
    %v573 = vunpack.c.l.b16 %v301
    %v574 = vunpack.c.h.b16 %v301
    %v575 = vunpack.c.l.b16 %v302
    %v576 = vunpack.c.h.b16 %v302
    %v577 = vunpack.c.l.b16 %v303
    %v578 = vunpack.c.h.b16 %v303
    %v579 = vunpack.c.l.b16 %v304
    %v580 = vunpack.c.h.b16 %v304
    %v581 = vunpack.c.l.b16 %v305
    %v582 = vunpack.c.h.b16 %v305
    %v583 = vunpack.c.l.b16 %v306
    %v584 = vunpack.c.h.b16 %v306
    %v585 = vunpack.c.l.b16 %v307
    %v586 = vunpack.c.h.b16 %v307
    %v587 = vunpack.c.l.b16 %v308
    %v588 = vunpack.c.h.b16 %v308
    %v589 = vunpack.c.l.b16 %v309
    %v590 = vunpack.c.h.b16 %v309
    %v591 = vunpack.c.l.b16 %v310
    %v592 = vunpack.c.h.b16 %v310
    %v593 = vunpack.c.l.b16 %v311
    %v594 = vunpack.c.h.b16 %v311
    %v595 = vunpack.c.l.b16 %v312
    %v596 = vunpack.c.h.b16 %v312
    %v597 = vunpack.c.l.b16 %v313
    %v598 = vunpack.c.h.b16 %v313
    %v599 = vunpack.c.l.b16 %v314
    %v600 = vunpack.c.h.b16 %v314
    %v601 = vunpack.c.l.b16 %v315
    %v602 = vunpack.c.h.b16 %v315
    %v603 = vunpack.c.l.b16 %v316
    %v604 = vunpack.c.h.b16 %v316
    %v605 = vunpack.c.l.b16 %v317
    %v606 = vunpack.c.h.b16 %v317
    %v607 = vunpack.c.l.b16 %v318
    %v608 = vunpack.c.h.b16 %v318
    %v609 = vunpack.c.l.b16 %v319
    %v610 = vunpack.c.h.b16 %v319
    %v611 = vunpack.c.l.b16 %v320
    %v612 = vunpack.c.h.b16 %v320
    %v613 = vunpack.c.l.b16 %v321
    %v614 = vunpack.c.h.b16 %v321
    %v615 = vunpack.c.l.b16 %v322
    %v616 = vunpack.c.h.b16 %v322
    %v617 = vunpack.c.l.b16 %v323
    %v618 = vunpack.c.h.b16 %v323
    %v619 = vunpack.c.l.b16 %v324
    %v620 = vunpack.c.h.b16 %v324
    %v621 = vunpack.c.l.b16 %v325
    %v622 = vunpack.c.h.b16 %v325
    %v623 = vunpack.c.l.b16 %v326
    %v624 = vunpack.c.h.b16 %v326
    %v625 = vunpack.c.l.b16 %v327
    %v626 = vunpack.c.h.b16 %v327
    %v627 = vunpack.c.l.b16 %v328
    %v628 = vunpack.c.h.b16 %v328
    %v629 = vunpack.c.l.b16 %v329
    %v630 = vunpack.c.h.b16 %v329
    %v631 = vunpack.c.l.b16 %v330
    %v632 = vunpack.c.h.b16 %v330
    %v633 = vunpack.c.l.b16 %v331
    %v634 = vunpack.c.h.b16 %v331
    %v635 = vunpack.c.l.b16 %v332
    %v636 = vunpack.c.h.b16 %v332
    %v637 = vunpack.c.l.b16 %v333
    %v638 = vunpack.c.h.b16 %v333
    %v639 = vunpack.c.l.b16 %v334
    %v640 = vunpack.c.h.b16 %v334
    %v641 = vpack.c.b16 %v447, %v445
    %v642 = vpack.c.b16 %v448, %v446
    %v643 = vpack.c.b16 %v451, %v449
    %v644 = vpack.c.b16 %v452, %v450
    %v645 = vpack.c.b16 %v455, %v453
    %v646 = vpack.c.b16 %v456, %v454
    %v647 = vpack.c.b16 %v459, %v457
    %v648 = vpack.c.b16 %v460, %v458
    %v649 = vpack.c.b16 %v463, %v461
    %v650 = vpack.c.b16 %v464, %v462
    %v651 = vpack.c.b16 %v467, %v465
    %v652 = vpack.c.b16 %v468, %v466
    %v653 = vpack.c.b16 %v471, %v469
    %v654 = vpack.c.b16 %v472, %v470
    %v655 = vpack.c.b16 %v475, %v473
    %v656 = vpack.c.b16 %v476, %v474
    %v657 = vpack.c.b16 %v479, %v477
    %v658 = vpack.c.b16 %v480, %v478
    %v659 = vpack.c.b16 %v483, %v481
    %v660 = vpack.c.b16 %v484, %v482
    %v661 = vpack.c.b16 %v487, %v485
    %v662 = vpack.c.b16 %v488, %v486
    %v663 = vpack.c.b16 %v491, %v489
    %v664 = vpack.c.b16 %v492, %v490
    %v665 = vpack.c.b16 %v495, %v493
    %v666 = vpack.c.b16 %v496, %v494
    %v667 = vpack.c.b16 %v499, %v497
    %v668 = vpack.c.b16 %v500, %v498
    %v669 = vpack.c.b16 %v503, %v501
    %v670 = vpack.c.b16 %v504, %v502
    %v671 = vpack.c.b16 %v507, %v505
    %v672 = vpack.c.b16 %v508, %v506
    %v673 = vpack.c.b16 %v511, %v509
    %v674 = vpack.c.b16 %v512, %v510
    %v675 = vpack.c.b16 %v515, %v513
    %v676 = vpack.c.b16 %v516, %v514
    %v677 = vpack.c.b16 %v519, %v517
    %v678 = vpack.c.b16 %v520, %v518
    %v679 = vpack.c.b16 %v523, %v521
    %v680 = vpack.c.b16 %v524, %v522
    %v681 = vpack.c.b16 %v527, %v525
    %v682 = vpack.c.b16 %v528, %v526
    %v683 = vpack.c.b16 %v531, %v529
    %v684 = vpack.c.b16 %v532, %v530
    %v685 = vpack.c.b16 %v535, %v533
    %v686 = vpack.c.b16 %v536, %v534
    %v687 = vpack.c.b16 %v539, %v537
    %v688 = vpack.c.b16 %v540, %v538
    %v689 = vpack.c.b16 %v543, %v541
    %v690 = vpack.c.b16 %v544, %v542
    %v691 = vpack.c.b16 %v547, %v545
    %v692 = vpack.c.b16 %v548, %v546
    %v693 = vpack.c.b16 %v551, %v549
    %v694 = vpack.c.b16 %v552, %v550
    %v695 = vpack.c.b16 %v555, %v553
    %v696 = vpack.c.b16 %v556, %v554
    %v697 = vpack.c.b16 %v559, %v557
    %v698 = vpack.c.b16 %v560, %v558
    %v699 = vpack.c.b16 %v563, %v561
    %v700 = vpack.c.b16 %v564, %v562
    %v701 = vpack.c.b16 %v567, %v565
    %v702 = vpack.c.b16 %v568, %v566
    %v703 = vpack.c.b16 %v571, %v569
    %v704 = vpack.c.b16 %v572, %v570
    %v705 = vpack.c.b16 %v575, %v573
    %v706 = vpack.c.b16 %v576, %v574
    %v707 = vpack.c.b16 %v579, %v577
    %v708 = vpack.c.b16 %v580, %v578
    %v709 = vpack.c.b16 %v583, %v581
    %v710 = vpack.c.b16 %v584, %v582
    %v711 = vpack.c.b16 %v587, %v585
    %v712 = vpack.c.b16 %v588, %v586
    %v713 = vpack.c.b16 %v591, %v589
    %v714 = vpack.c.b16 %v592, %v590
    %v715 = vpack.c.b16 %v595, %v593
    %v716 = vpack.c.b16 %v596, %v594
    %v717 = vpack.c.b16 %v599, %v597
    %v718 = vpack.c.b16 %v600, %v598
    %v719 = vpack.c.b16 %v603, %v601
    %v720 = vpack.c.b16 %v604, %v602
    %v721 = vpack.c.b16 %v607, %v605
    %v722 = vpack.c.b16 %v608, %v606
    %v723 = vpack.c.b16 %v611, %v609
    %v724 = vpack.c.b16 %v612, %v610
    %v725 = vpack.c.b16 %v615, %v613
    %v726 = vpack.c.b16 %v616, %v614
    %v727 = vpack.c.b16 %v619, %v617
    %v728 = vpack.c.b16 %v620, %v618
    %v729 = vpack.c.b16 %v623, %v621
    %v730 = vpack.c.b16 %v624, %v622
    %v731 = vpack.c.b16 %v627, %v625
    %v732 = vpack.c.b16 %v628, %v626
    %v733 = vpack.c.b16 %v631, %v629
    %v734 = vpack.c.b16 %v632, %v630
    %v735 = vpack.c.b16 %v635, %v633
    %v736 = vpack.c.b16 %v636, %v634
    %v737 = vpack.c.b16 %v639, %v637
    %v738 = vpack.c.b16 %v640, %v638
    %vm837 = vcmask 130048
    %v839 = vsel %vm837, %v236, 0
    %841 = vmatprep.subr.bf16.mxu0 %v656
    %842 = vmatpush1.bf16.msra.mxu0 %v655
    %843 = vmatprep.subr.bf16.mxu0 %v654
    %844 = vmatpush1.bf16.msra.mxu0 %v653
    %845 = vmatprep.subr.bf16.mxu0 %v652
    %846 = vmatpush1.bf16.msra.mxu0 %v651
    %847 = vmatprep.subr.bf16.mxu0 %v650
    %848 = vmatpush1.bf16.msra.mxu0 %v649
    %849 = vmatprep.subr.bf16.mxu0 %v648
    %850 = vmatpush1.bf16.msra.mxu0 %v647
    %851 = vmatprep.subr.bf16.mxu0 %v646
    %852 = vmatpush1.bf16.msra.mxu0 %v645
    %853 = vmatprep.subr.bf16.mxu0 %v644
    %854 = vmatpush1.bf16.msra.mxu0 %v643
    %855 = vmatprep.subr.bf16.mxu0 %v642
    %856 = vmatpush1.bf16.msra.mxu0 %v641
    %857 = vmatprep.subr.bf16.mxu0 %v672
    %858 = vmatpush2.bf16.msra.mxu0 %v671
    %859 = vmatprep.subr.bf16.mxu0 %v670
    %860 = vmatpush2.bf16.msra.mxu0 %v669
    %861 = vmatprep.subr.bf16.mxu0 %v668
    %862 = vmatpush2.bf16.msra.mxu0 %v667
    %863 = vmatprep.subr.bf16.mxu0 %v666
    %864 = vmatpush2.bf16.msra.mxu0 %v665
    %865 = vmatprep.subr.bf16.mxu0 %v664
    %866 = vmatpush2.bf16.msra.mxu0 %v663
    %867 = vmatprep.subr.bf16.mxu0 %v662
    %868 = vmatpush2.bf16.msra.mxu0 %v661
    %869 = vmatprep.subr.bf16.mxu0 %v660
    %870 = vmatpush2.bf16.msra.mxu0 %v659
    %871 = vmatprep.subr.bf16.mxu0 %v658
    %872 = vmatpush2.bf16.msra.mxu0 %v657
    %873 = vmatprep.mubr.bf16.mxu0 %v231
    %874 = vmatmul.mubr.bf16.gmra.mxu0 %v230
    %v875 = vpop.f32.mrf.mxu0
    %v876 = vadd.f32 %v340, %v875
    %v877 = vpop.f32.mrf.mxu0
    %v878 = vadd.f32 %v344, %v877
    %v879 = vpop.f32.mrf.mxu0
    %v880 = vadd.f32 %v340, %v879
    %v881 = vpop.f32.mrf.mxu0
    %v882 = vadd.f32 %v344, %v881
    %883 = vdwg.mxu0
    %884 = vmatprep.subr.bf16.mxu0 %v688
    %885 = vmatpush1.bf16.msra.mxu0 %v687
    %886 = vmatprep.subr.bf16.mxu0 %v686
    %887 = vmatpush1.bf16.msra.mxu0 %v685
    %888 = vmatprep.subr.bf16.mxu0 %v684
    %889 = vmatpush1.bf16.msra.mxu0 %v683
    %890 = vmatprep.subr.bf16.mxu0 %v682
    %891 = vmatpush1.bf16.msra.mxu0 %v681
    %892 = vmatprep.subr.bf16.mxu0 %v680
    %893 = vmatpush1.bf16.msra.mxu0 %v679
    %894 = vmatprep.subr.bf16.mxu0 %v678
    %895 = vmatpush1.bf16.msra.mxu0 %v677
    %896 = vmatprep.subr.bf16.mxu0 %v676
    %897 = vmatpush1.bf16.msra.mxu0 %v675
    %898 = vmatprep.subr.bf16.mxu0 %v674
    %899 = vmatpush1.bf16.msra.mxu0 %v673
    %900 = vmatprep.subr.bf16.mxu0 %v704
    %901 = vmatpush2.bf16.msra.mxu0 %v703
    %902 = vmatprep.subr.bf16.mxu0 %v702
    %903 = vmatpush2.bf16.msra.mxu0 %v701
    %904 = vmatprep.subr.bf16.mxu0 %v700
    %905 = vmatpush2.bf16.msra.mxu0 %v699
    %906 = vmatprep.subr.bf16.mxu0 %v698
    %907 = vmatpush2.bf16.msra.mxu0 %v697
    %908 = vmatprep.subr.bf16.mxu0 %v696
    %909 = vmatpush2.bf16.msra.mxu0 %v695
    %910 = vmatprep.subr.bf16.mxu0 %v694
    %911 = vmatpush2.bf16.msra.mxu0 %v693
    %912 = vmatprep.subr.bf16.mxu0 %v692
    %913 = vmatpush2.bf16.msra.mxu0 %v691
    %914 = vmatprep.subr.bf16.mxu0 %v690
    %915 = vmatpush2.bf16.msra.mxu0 %v689
    %916 = vmatprep.mubr.bf16.mxu0 %v233
    %917 = vmatmul.mubr.bf16.gmra.mxu0 %v232
    %v918 = vpop.f32.mrf.mxu0
    %v919 = vadd.f32 %v876, %v918
    %v920 = vpop.f32.mrf.mxu0
    %v921 = vadd.f32 %v878, %v920
    %v922 = vpop.f32.mrf.mxu0
    %v923 = vadd.f32 %v880, %v922
    %v924 = vpop.f32.mrf.mxu0
    %v925 = vadd.f32 %v882, %v924
    %926 = vdwg.mxu0
    %927 = vmatprep.subr.bf16.mxu0 %v720
    %928 = vmatpush1.bf16.msra.mxu0 %v719
    %929 = vmatprep.subr.bf16.mxu0 %v718
    %930 = vmatpush1.bf16.msra.mxu0 %v717
    %931 = vmatprep.subr.bf16.mxu0 %v716
    %932 = vmatpush1.bf16.msra.mxu0 %v715
    %933 = vmatprep.subr.bf16.mxu0 %v714
    %934 = vmatpush1.bf16.msra.mxu0 %v713
    %935 = vmatprep.subr.bf16.mxu0 %v712
    %936 = vmatpush1.bf16.msra.mxu0 %v711
    %937 = vmatprep.subr.bf16.mxu0 %v710
    %938 = vmatpush1.bf16.msra.mxu0 %v709
    %939 = vmatprep.subr.bf16.mxu0 %v708
    %940 = vmatpush1.bf16.msra.mxu0 %v707
    %941 = vmatprep.subr.bf16.mxu0 %v706
    %942 = vmatpush1.bf16.msra.mxu0 %v705
    %943 = vmatprep.subr.bf16.mxu0 %v736
    %944 = vmatpush2.bf16.msra.mxu0 %v735
    %945 = vmatprep.subr.bf16.mxu0 %v734
    %946 = vmatpush2.bf16.msra.mxu0 %v733
    %947 = vmatprep.subr.bf16.mxu0 %v732
    %948 = vmatpush2.bf16.msra.mxu0 %v731
    %949 = vmatprep.subr.bf16.mxu0 %v730
    %950 = vmatpush2.bf16.msra.mxu0 %v729
    %951 = vmatprep.subr.bf16.mxu0 %v728
    %952 = vmatpush2.bf16.msra.mxu0 %v727
    %953 = vmatprep.subr.bf16.mxu0 %v726
    %954 = vmatpush2.bf16.msra.mxu0 %v725
    %955 = vmatprep.subr.bf16.mxu0 %v724
    %956 = vmatpush2.bf16.msra.mxu0 %v723
    %957 = vmatprep.subr.bf16.mxu0 %v722
    %958 = vmatpush2.bf16.msra.mxu0 %v721
    %959 = vmatprep.mubr.bf16.mxu0 %v235
    %960 = vmatmul.mubr.bf16.gmra.mxu0 %v234
    %v961 = vpop.f32.mrf.mxu0
    %v962 = vadd.f32 %v919, %v961
    %v963 = vpop.f32.mrf.mxu0
    %v964 = vadd.f32 %v921, %v963
    %v965 = vpop.f32.mrf.mxu0
    %v966 = vadd.f32 %v923, %v965
    %v967 = vpop.f32.mrf.mxu0
    %v968 = vadd.f32 %v925, %v967
    %969 = vdwg.mxu0
    %970 = vmatprep.subr.bf16.mxu0 0
    %971 = vmatpush1.bf16.msra.mxu0 0
    %972 = vmatprep.subr.bf16.mxu0 0
    %973 = vmatpush1.bf16.msra.mxu0 0
    %974 = vmatprep.subr.bf16.mxu0 0
    %975 = vmatpush1.bf16.msra.mxu0 0
    %976 = vmatprep.subr.bf16.mxu0 0
    %977 = vmatpush1.bf16.msra.mxu0 0
    %978 = vmatprep.subr.bf16.mxu0 0
    %979 = vmatpush1.bf16.msra.mxu0 0
    %980 = vmatprep.subr.bf16.mxu0 0
    %981 = vmatpush1.bf16.msra.mxu0 0
    %982 = vmatprep.subr.bf16.mxu0 0
    %983 = vmatpush1.bf16.msra.mxu0 0
    %984 = vmatprep.subr.bf16.mxu0 %v738
    %985 = vmatpush1.bf16.msra.mxu0 %v737
    %986 = vmatprep.subr.bf16.mxu0 0
    %987 = vmatpush2.bf16.msra.mxu0 0
    %988 = vmatprep.subr.bf16.mxu0 0
    %989 = vmatpush2.bf16.msra.mxu0 0
    %990 = vmatprep.subr.bf16.mxu0 0
    %991 = vmatpush2.bf16.msra.mxu0 0
    %992 = vmatprep.subr.bf16.mxu0 0
    %993 = vmatpush2.bf16.msra.mxu0 0
    %994 = vmatprep.subr.bf16.mxu0 0
    %995 = vmatpush2.bf16.msra.mxu0 0
    %996 = vmatprep.subr.bf16.mxu0 0
    %997 = vmatpush2.bf16.msra.mxu0 0
    %998 = vmatprep.subr.bf16.mxu0 0
    %999 = vmatpush2.bf16.msra.mxu0 0
    %1000 = vmatprep.subr.bf16.mxu0 0
    %1001 = vmatpush2.bf16.msra.mxu0 0
    %1002 = vmatprep.mubr.bf16.mxu0 0
    %1003 = vmatmul.mubr.bf16.gmra.mxu0 %v839
    %v1004 = vpop.f32.mrf.mxu0
    %v1005 = vadd.f32 %v962, %v1004
    %v1006 = vpop.f32.mrf.mxu0
    %v1007 = vadd.f32 %v964, %v1006
    %v1008 = vpop.f32.mrf.mxu0
    %v1009 = vadd.f32 %v966, %v1008
    %v1010 = vpop.f32.mrf.mxu0
    %v1011 = vadd.f32 %v968, %v1010
    %1012 = vdwg.mxu0
    %v1013 = vmul.f32 %v1005, 0.01
    %v1014 = vmul.f32 %v1007, 0.01
    %v1015 = vmul.f32 %v1009, 0.01
    %v1016 = vmul.f32 %v1011, 0.01
    %v1017 = vmax.f32 %v1005, %v1013
    %v1018 = vmax.f32 %v1007, %v1014
    %v1019 = vmax.f32 %v1009, %v1015
    %v1020 = vmax.f32 %v1011, %v1016
    %v1021 = vadd.f32 %v1017, %v1018
    %1022 = vadd.xlane.f32.xlu0 %v1021
    %v1023 = vpop.xlane.xlu0 %1022
    %v1024 = vadd.f32 %v1019, %v1020
    %1025 = vadd.xlane.f32.xlu0 %v1024
    %v1026 = vpop.xlane.xlu0 %1025
    %v1027 = vmul.f32 %v1017, %v1017
    %v1028 = vmul.f32 %v1018, %v1018
    %v1029 = vmul.f32 %v1019, %v1019
    %v1030 = vmul.f32 %v1020, %v1020
    %v1031 = vadd.f32 %v1027, %v1028
    %1032 = vadd.xlane.f32.xlu0 %v1031
    %v1033 = vpop.xlane.xlu0 %1032
    %v1034 = vadd.f32 %v1029, %v1030
    %1035 = vadd.xlane.f32.xlu0 %v1034
    %v1036 = vpop.xlane.xlu0 %1035
    %v1037 = vmul.f32 %v1023, 0.005
    %v1038 = vmul.f32 %v1026, 0.005
    %v1039 = vmul.f32 %v1033, 0.005
    %v1040 = vmul.f32 %v1036, 0.005
    %v1041 = vmul.f32 %v1037, %v1037
    %v1042 = vmul.f32 %v1038, %v1038
    %v1043 = vsub.f32 %v1039, %v1041
    %v1044 = vsub.f32 %v1040, %v1042
    %v1045 = vsub.f32 %v1017, %v1037
    %v1046 = vsub.f32 %v1018, %v1037
    %v1047 = vsub.f32 %v1019, %v1038
    %v1048 = vsub.f32 %v1020, %v1038
    %v1049 = vadd.f32 %v1043, 1e-05
    %v1050 = vadd.f32 %v1044, 1e-05
    %v1051 = vrsqrt.pop %v1049
    %v1052 = vrsqrt.pop %v1050
    %v1053 = vmul.f32 %v1045, %v1051
    %v1054 = vmul.f32 %v1046, %v1051
    %v1055 = vmul.f32 %v1047, %v1052
    %v1056 = vmul.f32 %v1048, %v1052
    %v1057 = vld [vmem:[%s3] sm:$0x3]
    %v1059 = vlaneseq
    %v1060 = vshrl.u32 %v1059, 7
    %v1061 = vsub.s32 0, %v1060
    %v1062 = vrot.slane %v1057, %v1061
    %v1063 = vlaneseq
    %v1064 = vshrl.u32 %v1063, 7
    %v1065 = vsub.s32 1, %v1064
    %v1066 = vrot.slane %v1057, %v1065
    %v1069 = vmul.f32 %v1053, %v1062
    %v1070 = vmul.f32 %v1054, %v1066
    %v1071 = vmul.f32 %v1055, %v1062
    %v1072 = vmul.f32 %v1056, %v1066
    %v1073 = vld [vmem:[%s4] sm:$0x3]
    %v1075 = vlaneseq
    %v1076 = vshrl.u32 %v1075, 7
    %v1077 = vsub.s32 0, %v1076
    %v1078 = vrot.slane %v1073, %v1077
    %v1079 = vlaneseq
    %v1080 = vshrl.u32 %v1079, 7
    %v1081 = vsub.s32 1, %v1080
    %v1082 = vrot.slane %v1073, %v1081
    %v1085 = vadd.f32 %v1069, %v1078
    %v1086 = vadd.f32 %v1070, %v1082
    %v1087 = vadd.f32 %v1071, %v1078
    %v1088 = vadd.f32 %v1072, %v1082
    %v1089 = vpack.c.bf16 %v1087, %v1085
    %v1090 = vpack.c.bf16 %v1088, %v1086
    %v1091 = vld [vmem:[%s5] sm:$0xf]
    %v1092 = vld [vmem:[%s5 + $0x4] sm:$0xf]
    %v1093 = vld [vmem:[%s5 + $0x8] sm:$0xf]
    %v1094 = vld [vmem:[%s5 + $0xc] sm:$0xf]
    %v1095 = vld [vmem:[%s5 + $0x10] sm:$0xf]
    %v1096 = vld [vmem:[%s5 + $0x14] sm:$0xf]
    %v1097 = vld [vmem:[%s5 + $0x18] sm:$0xf]
    %v1098 = vld [vmem:[%s5 + $0x1c] sm:$0xf]
    %v1099 = vld [vmem:[%s5 + $0x20] sm:$0xf]
    %v1100 = vld [vmem:[%s5 + $0x24] sm:$0xf]
    %v1101 = vld [vmem:[%s5 + $0x28] sm:$0xf]
    %v1102 = vld [vmem:[%s5 + $0x2c] sm:$0xf]
    %v1103 = vld [vmem:[%s5 + $0x30] sm:$0xf]
    %v1104 = vld [vmem:[%s5 + $0x34] sm:$0xf]
    %v1105 = vld [vmem:[%s5 + $0x38] sm:$0xf]
    %v1106 = vld [vmem:[%s5 + $0x3c] sm:$0xf]
    %v1107 = vld [vmem:[%s5 + $0x40] sm:$0xf]
    %v1108 = vld [vmem:[%s5 + $0x44] sm:$0xf]
    %v1109 = vld [vmem:[%s5 + $0x48] sm:$0xf]
    %v1110 = vld [vmem:[%s5 + $0x4c] sm:$0xf]
    %v1111 = vld [vmem:[%s5 + $0x50] sm:$0xf]
    %v1112 = vld [vmem:[%s5 + $0x54] sm:$0xf]
    %v1113 = vld [vmem:[%s5 + $0x58] sm:$0xf]
    %v1114 = vld [vmem:[%s5 + $0x5c] sm:$0xf]
    %v1115 = vld [vmem:[%s5 + $0x60] sm:$0xf]
    %v1116 = vld [vmem:[%s5 + $0x64] sm:$0xf]
    %v1117 = vld [vmem:[%s5 + $0x68] sm:$0xf]
    %v1118 = vld [vmem:[%s5 + $0x6c] sm:$0xf]
    %v1119 = vld [vmem:[%s5 + $0x70] sm:$0xf]
    %v1120 = vld [vmem:[%s5 + $0x74] sm:$0xf]
    %v1121 = vld [vmem:[%s5 + $0x78] sm:$0xf]
    %v1122 = vld [vmem:[%s5 + $0x7c] sm:$0xf]
    %v1123 = vld [vmem:[%s6] sm:$0x1]
    %v1125 = vlaneseq
    %v1126 = vshrl.u32 %v1125, 7
    %v1127 = vsub.s32 0, %v1126
    %v1128 = vrot.slane %v1123, %v1127
    %v1162 = vunpack.c.l.b16 %v1091
    %v1163 = vunpack.c.l.b16 %v1092
    %v1164 = vunpack.c.l.b16 %v1093
    %v1165 = vunpack.c.l.b16 %v1094
    %v1166 = vunpack.c.l.b16 %v1095
    %v1167 = vunpack.c.l.b16 %v1096
    %v1168 = vunpack.c.l.b16 %v1097
    %v1169 = vunpack.c.l.b16 %v1098
    %v1170 = vunpack.c.l.b16 %v1099
    %v1171 = vunpack.c.l.b16 %v1100
    %v1172 = vunpack.c.l.b16 %v1101
    %v1173 = vunpack.c.l.b16 %v1102
    %v1174 = vunpack.c.l.b16 %v1103
    %v1175 = vunpack.c.l.b16 %v1104
    %v1176 = vunpack.c.l.b16 %v1105
    %v1177 = vunpack.c.l.b16 %v1106
    %v1178 = vunpack.c.l.b16 %v1107
    %v1179 = vunpack.c.l.b16 %v1108
    %v1180 = vunpack.c.l.b16 %v1109
    %v1181 = vunpack.c.l.b16 %v1110
    %v1182 = vunpack.c.l.b16 %v1111
    %v1183 = vunpack.c.l.b16 %v1112
    %v1184 = vunpack.c.l.b16 %v1113
    %v1185 = vunpack.c.l.b16 %v1114
    %v1186 = vunpack.c.l.b16 %v1115
    %v1187 = vunpack.c.l.b16 %v1116
    %v1188 = vunpack.c.l.b16 %v1117
    %v1189 = vunpack.c.l.b16 %v1118
    %v1190 = vunpack.c.l.b16 %v1119
    %v1191 = vunpack.c.l.b16 %v1120
    %v1192 = vunpack.c.l.b16 %v1121
    %v1193 = vunpack.c.l.b16 %v1122
    %v1194 = vpack.c.b16 %v1163, %v1162
    %v1195 = vpack.c.b16 %v1165, %v1164
    %v1196 = vpack.c.b16 %v1167, %v1166
    %v1197 = vpack.c.b16 %v1169, %v1168
    %v1198 = vpack.c.b16 %v1171, %v1170
    %v1199 = vpack.c.b16 %v1173, %v1172
    %v1200 = vpack.c.b16 %v1175, %v1174
    %v1201 = vpack.c.b16 %v1177, %v1176
    %v1202 = vpack.c.b16 %v1179, %v1178
    %v1203 = vpack.c.b16 %v1181, %v1180
    %v1204 = vpack.c.b16 %v1183, %v1182
    %v1205 = vpack.c.b16 %v1185, %v1184
    %v1206 = vpack.c.b16 %v1187, %v1186
    %v1207 = vpack.c.b16 %v1189, %v1188
    %v1208 = vpack.c.b16 %v1191, %v1190
    %v1209 = vpack.c.b16 %v1193, %v1192
    %1226 = vmatprep.subr.bf16.mxu0 0
    %1227 = vmatpush1.bf16.msra.mxu0 %v1201
    %1228 = vmatprep.subr.bf16.mxu0 0
    %1229 = vmatpush1.bf16.msra.mxu0 %v1200
    %1230 = vmatprep.subr.bf16.mxu0 0
    %1231 = vmatpush1.bf16.msra.mxu0 %v1199
    %1232 = vmatprep.subr.bf16.mxu0 0
    %1233 = vmatpush1.bf16.msra.mxu0 %v1198
    %1234 = vmatprep.subr.bf16.mxu0 0
    %1235 = vmatpush1.bf16.msra.mxu0 %v1197
    %1236 = vmatprep.subr.bf16.mxu0 0
    %1237 = vmatpush1.bf16.msra.mxu0 %v1196
    %1238 = vmatprep.subr.bf16.mxu0 0
    %1239 = vmatpush1.bf16.msra.mxu0 %v1195
    %1240 = vmatprep.subr.bf16.mxu0 0
    %1241 = vmatpush1.bf16.msra.mxu0 %v1194
    %1242 = vmatprep.subr.bf16.mxu0 0
    %1243 = vmatpush2.bf16.msra.mxu0 %v1209
    %1244 = vmatprep.subr.bf16.mxu0 0
    %1245 = vmatpush2.bf16.msra.mxu0 %v1208
    %1246 = vmatprep.subr.bf16.mxu0 0
    %1247 = vmatpush2.bf16.msra.mxu0 %v1207
    %1248 = vmatprep.subr.bf16.mxu0 0
    %1249 = vmatpush2.bf16.msra.mxu0 %v1206
    %1250 = vmatprep.subr.bf16.mxu0 0
    %1251 = vmatpush2.bf16.msra.mxu0 %v1205
    %1252 = vmatprep.subr.bf16.mxu0 0
    %1253 = vmatpush2.bf16.msra.mxu0 %v1204
    %1254 = vmatprep.subr.bf16.mxu0 0
    %1255 = vmatpush2.bf16.msra.mxu0 %v1203
    %1256 = vmatprep.subr.bf16.mxu0 0
    %1257 = vmatpush2.bf16.msra.mxu0 %v1202
    %1258 = vmatprep.mubr.bf16.mxu0 %v1090
    %1259 = vmatmul.mubr.bf16.gmra.mxu0 %v1089
    %v1260 = vpop.f32.mrf.mxu0
    %v1261 = vadd.f32 %v1128, %v1260
    %v1262 = vpop.f32.mrf.mxu0
    %v1263 = vpop.f32.mrf.mxu0
    %v1264 = vadd.f32 %v1128, %v1263
    %v1265 = vpop.f32.mrf.mxu0
    %1266 = vdwg.mxu0
    %v1267 = vmul.f32 %v1261, 0.01
    %v1268 = vmul.f32 %v1264, 0.01
    %v1269 = vmax.f32 %v1261, %v1267
    %v1270 = vmax.f32 %v1264, %v1268
    %vm1271 = vcmask 80896
    %1272 = vst.msk [vmem:[#allocation5] sm:$0xff] %vm1271, %v1269
    %1273 = vst.msk [vmem:[#allocation5 + $0x8] sm:$0xff] %vm1271, %v1270
    // Predicated region
    $region34: #{tpu_custom_call.1} parent=1 // pred_check
      _
    $region35: #{tpu_custom_call.1} parent=1 // pred_check_branch
      %1275 = sbr.rel (0) target = $region37
    $region36: #{tpu_custom_call.1} parent=1 // pred_region
      %s1277 = ssub.s32 256, 32
      %1278 = vsyncadd [#allocation4], %s1277
      %s1279 = sshll.u32 [#allocation5], 4
      %s1280 = int_to_ptr.vmem [resolvable:$true] %s1279
      %1285 = dma.vmem_to_hbm [thread:$0]  %s1280, 32, %s7, [#allocation4], 32, 32, 2
    $region37: #{tpu_custom_call.1} parent=1 // pred_fallthru
      _
    // Predicated region
    $region38: #{tpu_custom_call.1} parent=1 // pred_check
      _
    $region39: #{tpu_custom_call.1} parent=1 // pred_check_branch
      %1287 = sbr.rel (0) target = $region41
    $region40: #{tpu_custom_call.1} parent=1 // pred_region
      %1288 = dma.done [#allocation4], 256
    $region41: #{tpu_custom_call.1} parent=1 // pred_fallthru
      _
    %1289 = vsyncpa [#allocation3], 1
    %1290 = vsyncpa [#allocation4], 1

</llo_original>
